<compile_context>
chip_gen: v7x
topology: tpu7x:2x2x1
jax: 0.10.0
libtpu: 0.0.40
codegen_flags: <defaults>
</compile_context>

<pallas_src>
import jax
import jax.numpy as jnp
from jax.experimental import pallas as pl
from jax.experimental.pallas import tpu as pltpu


def _round_up(n, m):
    return ((n + m - 1) // m) * m


def _vmem_budget_bytes():
    """~3/4 of per-core VMEM; conservative 48 MiB fallback (v7x per-TC)."""
    cap = None
    try:
        info = pltpu.get_tpu_info()
        cap = getattr(info, "vmem_capacity_bytes", None)
    except Exception:
        cap = None
    if not cap:
        cap = 64 * 1024 * 1024
    return min(int(cap) * 3 // 4, 96 * 1024 * 1024)


def _make_fused_mlp_kernel(n_hidden, win_starts, total_pad):
    """Whole-network forward for one batch tile.

    Ref order:
      inputs : x, (W_0, b_0), ..., (W_{n-1}, b_{n-1}), (W_out, b_out)
      output : packed f32 slab (block_m, total_pad) holding every layer's z
               (real columns only) plus the logits column.
    Weights are pre-padded so each layer's real block already sits at its
    in-window lane offset -> all in-kernel lane ops are 128-aligned.
    """
    n_in = 1 + 2 * (n_hidden + 1)

    def kernel(*refs):
        x_ref = refs[0]
        out_ref = refs[n_in]
        bm = x_ref.shape[0]
        compute_dtype = refs[1].dtype

        def placed(z, win_start):
            # z: (bm, zw) f32; real values already at their in-window lanes,
            # exact zeros elsewhere (weights/bias are zero-padded). Widen to
            # the slab width with 128-aligned zero blocks only.
            parts = []
            if win_start > 0:
                parts.append(jnp.zeros((bm, win_start), jnp.float32))
            parts.append(z)
            tail = total_pad - win_start - z.shape[1]
            if tail > 0:
                parts.append(jnp.zeros((bm, tail), jnp.float32))
            return parts[0] if len(parts) == 1 else jnp.concatenate(parts, axis=1)

        h = x_ref[...]                                   # compute dtype (bm, in_pad)
        slab = None
        for l in range(n_hidden + 1):
            w_ref = refs[1 + 2 * l]
            b_ref = refs[2 + 2 * l]
            z = jnp.dot(h, w_ref[...], preferred_element_type=jnp.float32)
            z = z + b_ref[...]                           # (1, zw) broadcasts, f32
            p = placed(z, win_starts[l])
            slab = p if slab is None else slab + p       # disjoint real columns
            if l < n_hidden:
                h = jnp.maximum(z, 0.0).astype(compute_dtype)
        out_ref[...] = slab                              # single lane-dense store

    return kernel


class MLPPallas:
    """JAX/Pallas re-implementation of the PyTorch MLP forward pass."""

    LANE = 128
    MAX_BLOCK_M = 1024

    def __init__(self, input_size, hidden_sizes, key, mxu_dtype=jnp.bfloat16):
        self.input_size = int(input_size)
        self.hidden_sizes = [int(h) for h in hidden_sizes]
        self.mxu_dtype = mxu_dtype
        LANE = self.LANE
        n_hidden = len(self.hidden_sizes)
        self._n_hidden = n_hidden

        self.in_pad = max(LANE, _round_up(self.input_size, LANE))

        # ---- Packed output-slab layout (hidden z's then the logit column).
        # Offsets are packed back-to-back; a range is bumped to the next
        # 128-lane window only if it would straddle one, so every in-kernel
        # lane op stays 128-aligned.
        widths = self.hidden_sizes + [1]
        offsets, cur = [], 0
        for w in widths:
            if w >= LANE or (cur % LANE) + w > LANE:
                cur = _round_up(cur, LANE)
            offsets.append(cur)
            cur += w
        self.offsets = offsets
        self.logit_offset = offsets[-1]
        self.total_pad = max(LANE, _round_up(cur, LANE))
        self.col_in_win = [o % LANE for o in offsets]
        self.win_start = [o - (o % LANE) for o in offsets]
        self.zwidth = [_round_up(c + w, LANE)
                       for c, w in zip(self.col_in_win, widths)]

        # ---- Parameters (nn.Linear default init), padded/placed for the kernel.
        in_dims = [self.input_size] + self.hidden_sizes
        out_dims = widths
        self.weights = []            # unpadded f32 (W (fin,fout), b (fout,))
        flat = []
        prev_pad, prev_c = self.in_pad, 0
        for l in range(n_hidden + 1):
            fin, fout = in_dims[l], out_dims[l]
            key, k1, k2 = jax.random.split(key, 3)
            bound = 1.0 / (fin ** 0.5)
            w = jax.random.uniform(k1, (fin, fout), jnp.float32, -bound, bound)
            b = jax.random.uniform(k2, (fout,), jnp.float32, -bound, bound)
            self.weights.append((w, b))
            c, zw = self.col_in_win[l], self.zwidth[l]
            w_pad = (jnp.zeros((prev_pad, zw), self.mxu_dtype)
                     .at[prev_c:prev_c + fin, c:c + fout]
                     .set(w.astype(self.mxu_dtype)))
            b_pad = jnp.zeros((1, zw), jnp.float32).at[0, c:c + fout].set(b)
            flat += [w_pad, b_pad]
            prev_pad, prev_c = zw, c
        self._flat_params = flat

        # ---- Generation-aware VMEM budget -> batch-tile cap.
        self._vmem_limit = _vmem_budget_bytes()
        self._row_cap = self._compute_row_cap(self._vmem_limit)

        self._fwd = jax.jit(self._forward_impl)

    # -- tiling helpers ------------------------------------------------------
    def _compute_row_cap(self, budget):
        itemsize = jnp.dtype(self.mxu_dtype).itemsize
        max_zw = max(self.zwidth)
        per_row = (2 * self.in_pad * itemsize       # x tile, double-buffered
                   + 2 * self.total_pad * 4         # output slab, double-buffered
                   + 2 * self.total_pad * 4         # slab accumulation temporaries
                   + 2 * max_zw * (4 + itemsize))   # z / h temporaries
        weight_bytes = sum(int(p.size) * p.dtype.itemsize for p in self._flat_params)
        avail = budget - 2 * weight_bytes - (2 << 20)
        cap = max(16, min(avail // per_row, self.MAX_BLOCK_M))
        return int(cap) // 16 * 16

    def _block_plan(self, batch):
        # Pad batch to a multiple of 16 (bf16 sublane packing), then pick the
        # multiple-of-16 tile <= VMEM cap that minimizes wasted rows + per-step
        # overhead, preferring >=2 grid steps (keeps both v7x TCs busy).
        pb = _round_up(max(int(batch), 1), 16)
        cap = max(16, min(self._row_cap, pb))
        best_d, best_cost = 16, None
        for d in range(16, cap + 1, 16):
            padded = _round_up(pb, d)
            steps = padded // d
            cost = (padded - pb) + 4 * steps
            if pb >= 32 and steps < 2:
                cost += pb
            if best_cost is None or cost < best_cost or (cost == best_cost and d > best_d):
                best_d, best_cost = d, cost
        return best_d, _round_up(pb, best_d)

    # -- forward -------------------------------------------------------------
    def _forward_impl(self, x, *flat_params):
        n_hidden = self._n_hidden
        x2d = x.reshape(-1, self.input_size).astype(jnp.float32)  # x.view(-1, D)
        batch = x2d.shape[0]

        block_m, padded_batch = self._block_plan(batch)
        grid = (padded_batch // block_m,)

        xb = x2d.astype(self.mxu_dtype)
        pad_rows = padded_batch - batch
        pad_cols = self.in_pad - self.input_size
        if pad_rows or pad_cols:
            xb = jnp.pad(xb, ((0, pad_rows), (0, pad_cols)))

        in_specs = [pl.BlockSpec((block_m, self.in_pad), lambda i: (i, 0))]
        for p in flat_params:
            # Resident weight/bias blocks reused by every grid step.
            in_specs.append(pl.BlockSpec(p.shape, lambda i: (0, 0)))
        out_spec = pl.BlockSpec((block_m, self.total_pad), lambda i: (i, 0))
        out_shape = jax.ShapeDtypeStruct((padded_batch, self.total_pad), jnp.float32)

        flops = 0
        prev = self.in_pad
        for zw in self.zwidth:
            flops += 2 * padded_batch * prev * zw
            prev = zw
        bytes_accessed = (int(xb.size) * xb.dtype.itemsize
                          + sum(int(p.size) * p.dtype.itemsize for p in flat_params)
                          + padded_batch * self.total_pad * 4)

        slab = pl.pallas_call(
            _make_fused_mlp_kernel(n_hidden, self.win_start, self.total_pad),
            out_shape=out_shape,
            grid=grid,
            in_specs=in_specs,
            out_specs=out_spec,
            compiler_params=pltpu.CompilerParams(
                dimension_semantics=("parallel",),     # shard batch over TCs
                vmem_limit_bytes=int(self._vmem_limit),
            ),
            cost_estimate=pl.CostEstimate(
                flops=int(flops), transcendentals=0,
                bytes_accessed=int(bytes_accessed)),
        )(xb, *flat_params)

        zs, hs = [], []
        for l, w in enumerate(self.hidden_sizes):
            z = slab[:batch, self.offsets[l]:self.offsets[l] + w]
            zs.append(z)
            hs.append(jnp.maximum(z, 0.0))   # activations recomputed (not stored)
        logits = slab[:batch, self.logit_offset:self.logit_offset + 1]
        return x2d, logits, tuple(hs), tuple(zs)

    def forward(self, x):
        x2d, logits, hs, zs = self._fwd(x, *self._flat_params)
        activations = [x2d] + list(hs)
        linear_combs = list(zs) + [logits]
        # TODO(synk): retain_grad / requires_grad_ are PyTorch autograd
        # bookkeeping with no Pallas equivalent; per-example grads would be a
        # separate VJP built on the returned (activations, linear_combs).
        # Note: the kernel consumes x cast to mxu_dtype; activations[0] is the
        # f32 input to match PyTorch return semantics.
        return logits, activations, linear_combs


if __name__ == "__main__":
    key = jax.random.PRNGKey(0)
    key, k_in, k_params = jax.random.split(key, 3)

    batch = 8
    input_size = 32
    hidden_sizes = [32, 16]

    x = jax.random.normal(k_in, (batch, input_size), dtype=jnp.float32)

    model = MLPPallas(input_size, hidden_sizes, k_params)
    logits, activations, linear_combs = model.forward(x)
    jax.block_until_ready((logits, activations, linear_combs))

    # Plain-JAX reference with the same bf16-operand / f32-accumulate recipe.
    ref_h = x.astype(jnp.bfloat16)
    ref_zs, ref_hs = [], []
    for (w, b) in model.weights[:-1]:
        z = jnp.dot(ref_h, w.astype(jnp.bfloat16),
                    preferred_element_type=jnp.float32) + b
        h = jnp.maximum(z, 0.0)
        ref_zs.append(z)
        ref_hs.append(h)
        ref_h = h.astype(jnp.bfloat16)
    wo, bo = model.weights[-1]
    ref_logits = jnp.dot(ref_h, wo.astype(jnp.bfloat16),
                         preferred_element_type=jnp.float32) + bo

    assert logits.shape == (batch, 1)
    assert len(activations) == len(hidden_sizes) + 1
    assert len(linear_combs) == len(hidden_sizes) + 1
    assert activations[0].shape == (batch, input_size)
    tol = dict(atol=5e-3, rtol=5e-3)
    assert jnp.allclose(logits, ref_logits, **tol), "logits mismatch"
    for z, rz in zip(linear_combs[:-1], ref_zs):
        assert jnp.allclose(z, rz, **tol), "linear-combination mismatch"
    for h, rh in zip(activations[1:], ref_hs):
        assert jnp.allclose(h, rh, **tol), "activation mismatch"

    print("KERNEL_OK")
</pallas_src>

<mosaic_0001>
module attributes {stable_mosaic.version = 11 : i64} {
  func.func @kernel(%arg0: i32, %arg1: memref<16x128xbf16, #tpu.memory_space<vmem>>, %arg2: memref<128x128xbf16, #tpu.memory_space<vmem>>, %arg3: memref<1x128xf32, #tpu.memory_space<vmem>>, %arg4: memref<128x128xbf16, #tpu.memory_space<vmem>>, %arg5: memref<1x128xf32, #tpu.memory_space<vmem>>, %arg6: memref<128x128xbf16, #tpu.memory_space<vmem>>, %arg7: memref<1x128xf32, #tpu.memory_space<vmem>>, %arg8: memref<16x128xf32, #tpu.memory_space<vmem>>) attributes {dimension_semantics = [#tpu.dimension_semantics<parallel>], iteration_bounds = array<i64: 1>, scalar_prefetch = 0 : i64, scratch_operands = 0 : i64, tpu.core_type = #tpu.core_type<tc>, window_params = [{transform_indices = @transform_0, window_bounds = array<i64: 16, 128>}, {pipeline_mode = #tpu.pipeline_mode<synchronous>, transform_indices = @transform_1, window_bounds = array<i64: 128, 128>}, {pipeline_mode = #tpu.pipeline_mode<synchronous>, transform_indices = @transform_2, window_bounds = array<i64: 1, 128>}, {pipeline_mode = #tpu.pipeline_mode<synchronous>, transform_indices = @transform_3, window_bounds = array<i64: 128, 128>}, {pipeline_mode = #tpu.pipeline_mode<synchronous>, transform_indices = @transform_4, window_bounds = array<i64: 1, 128>}, {pipeline_mode = #tpu.pipeline_mode<synchronous>, transform_indices = @transform_5, window_bounds = array<i64: 128, 128>}, {pipeline_mode = #tpu.pipeline_mode<synchronous>, transform_indices = @transform_6, window_bounds = array<i64: 1, 128>}, {transform_indices = @transform_7, window_bounds = array<i64: 16, 128>}]} {
    %c0 = arith.constant 0 : index
    %c0_0 = arith.constant 0 : index
    %0 = vector.load %arg1[%c0, %c0_0] : memref<16x128xbf16, #tpu.memory_space<vmem>>, vector<16x128xbf16>
    %c0_1 = arith.constant 0 : index
    %c0_2 = arith.constant 0 : index
    %1 = vector.load %arg2[%c0_1, %c0_2] : memref<128x128xbf16, #tpu.memory_space<vmem>>, vector<128x128xbf16>
    %cst = arith.constant dense<0.000000e+00> : vector<16x128xf32>
    %2 = tpu.matmul %0, %1, %cst {dimension_numbers = #tpu.dot_dimension_numbers<[1], [0], [0], [1], [0, 0, 1, 1], [], []>} : vector<16x128xbf16>, vector<128x128xbf16>, vector<16x128xf32> -> vector<16x128xf32>
    %c0_3 = arith.constant 0 : index
    %c0_4 = arith.constant 0 : index
    %3 = vector.load %arg3[%c0_3, %c0_4] : memref<1x128xf32, #tpu.memory_space<vmem>>, vector<1x128xf32>
    %4 = vector.broadcast %3 : vector<1x128xf32> to vector<16x128xf32>
    %5 = arith.addf %2, %4 : vector<16x128xf32>
    %cst_5 = arith.constant 0.000000e+00 : f32
    %6 = vector.broadcast %cst_5 : f32 to vector<16x128xf32>
    %7 = arith.maximumf %5, %6 : vector<16x128xf32>
    %8 = arith.truncf %7 : vector<16x128xf32> to vector<16x128xbf16>
    %c0_6 = arith.constant 0 : index
    %c0_7 = arith.constant 0 : index
    %9 = vector.load %arg4[%c0_6, %c0_7] : memref<128x128xbf16, #tpu.memory_space<vmem>>, vector<128x128xbf16>
    %cst_8 = arith.constant dense<0.000000e+00> : vector<16x128xf32>
    %10 = tpu.matmul %8, %9, %cst_8 {dimension_numbers = #tpu.dot_dimension_numbers<[1], [0], [0], [1], [0, 0, 1, 1], [], []>} : vector<16x128xbf16>, vector<128x128xbf16>, vector<16x128xf32> -> vector<16x128xf32>
    %c0_9 = arith.constant 0 : index
    %c0_10 = arith.constant 0 : index
    %11 = vector.load %arg5[%c0_9, %c0_10] : memref<1x128xf32, #tpu.memory_space<vmem>>, vector<1x128xf32>
    %12 = vector.broadcast %11 : vector<1x128xf32> to vector<16x128xf32>
    %13 = arith.addf %10, %12 : vector<16x128xf32>
    %14 = arith.addf %5, %13 : vector<16x128xf32>
    %cst_11 = arith.constant 0.000000e+00 : f32
    %15 = vector.broadcast %cst_11 : f32 to vector<16x128xf32>
    %16 = arith.maximumf %13, %15 : vector<16x128xf32>
    %17 = arith.truncf %16 : vector<16x128xf32> to vector<16x128xbf16>
    %c0_12 = arith.constant 0 : index
    %c0_13 = arith.constant 0 : index
    %18 = vector.load %arg6[%c0_12, %c0_13] : memref<128x128xbf16, #tpu.memory_space<vmem>>, vector<128x128xbf16>
    %cst_14 = arith.constant dense<0.000000e+00> : vector<16x128xf32>
    %19 = tpu.matmul %17, %18, %cst_14 {dimension_numbers = #tpu.dot_dimension_numbers<[1], [0], [0], [1], [0, 0, 1, 1], [], []>} : vector<16x128xbf16>, vector<128x128xbf16>, vector<16x128xf32> -> vector<16x128xf32>
    %c0_15 = arith.constant 0 : index
    %c0_16 = arith.constant 0 : index
    %20 = vector.load %arg7[%c0_15, %c0_16] : memref<1x128xf32, #tpu.memory_space<vmem>>, vector<1x128xf32>
    %21 = vector.broadcast %20 : vector<1x128xf32> to vector<16x128xf32>
    %22 = arith.addf %19, %21 : vector<16x128xf32>
    %23 = arith.addf %14, %22 : vector<16x128xf32>
    %c0_17 = arith.constant 0 : index
    %c0_18 = arith.constant 0 : index
    %24 = vector.load %arg8[%c0_17, %c0_18] : memref<16x128xf32, #tpu.memory_space<vmem>>, vector<16x128xf32>
    tpu.vector_store %arg8[%c0_17, %c0_18], %23 {strides = array<i32>} : memref<16x128xf32, #tpu.memory_space<vmem>>, vector<16x128xf32>,
    return
  }
  func.func @transform_0(%arg0: i32) -> (i32, i32) {
    %c0_i32 = arith.constant 0 : i32
    %c0_i32_0 = arith.constant 0 : i32
    return %arg0, %c0_i32 : i32, i32
  }
  func.func @transform_1(%arg0: i32) -> (i32, i32) {
    %c0_i32 = arith.constant 0 : i32
    %c0_i32_0 = arith.constant 0 : i32
    %c0_i32_1 = arith.constant 0 : i32
    return %c0_i32, %c0_i32_0 : i32, i32
  }
  func.func @transform_2(%arg0: i32) -> (i32, i32) {
    %c0_i32 = arith.constant 0 : i32
    %c0_i32_0 = arith.constant 0 : i32
    %c0_i32_1 = arith.constant 0 : i32
    return %c0_i32, %c0_i32_0 : i32, i32
  }
  func.func @transform_3(%arg0: i32) -> (i32, i32) {
    %c0_i32 = arith.constant 0 : i32
    %c0_i32_0 = arith.constant 0 : i32
    %c0_i32_1 = arith.constant 0 : i32
    return %c0_i32, %c0_i32_0 : i32, i32
  }
  func.func @transform_4(%arg0: i32) -> (i32, i32) {
    %c0_i32 = arith.constant 0 : i32
    %c0_i32_0 = arith.constant 0 : i32
    %c0_i32_1 = arith.constant 0 : i32
    return %c0_i32, %c0_i32_0 : i32, i32
  }
  func.func @transform_5(%arg0: i32) -> (i32, i32) {
    %c0_i32 = arith.constant 0 : i32
    %c0_i32_0 = arith.constant 0 : i32
    %c0_i32_1 = arith.constant 0 : i32
    return %c0_i32, %c0_i32_0 : i32, i32
  }
  func.func @transform_6(%arg0: i32) -> (i32, i32) {
    %c0_i32 = arith.constant 0 : i32
    %c0_i32_0 = arith.constant 0 : i32
    %c0_i32_1 = arith.constant 0 : i32
    return %c0_i32, %c0_i32_0 : i32, i32
  }
  func.func @transform_7(%arg0: i32) -> (i32, i32) {
    %c0_i32 = arith.constant 0 : i32
    %c0_i32_0 = arith.constant 0 : i32
    return %arg0, %c0_i32 : i32, i32
  }
}

</mosaic_0001>

<llo_original>
// kernel: _forward_impl.1
$region0: #{_forward_impl.1}
  #allocation0 [shape = 'u32[]', space=smem, size = 0x4, offset = 0x4, fixed_abs, tag = 'smem constant byte address 0x4 - core index']
  #allocation1 [shape = 'u32[144,128]{1,0:T(1,128)}', space=vmem, size = 0x12000, scoped, tag = 'internal scratch']
  %s0 = inlined_call_operand.vmem [shape: bf16[16,128], index: 0, kind: input, shape index: {}]
  %s1 = inlined_call_operand.hbm [shape: bf16[128,128], index: 1, kind: input, shape index: {}]
  %s2 = inlined_call_operand.vmem [shape: f32[1,128], index: 2, kind: input, shape index: {}]
  %s3 = inlined_call_operand.hbm [shape: bf16[128,128], index: 3, kind: input, shape index: {}]
  %s4 = inlined_call_operand.vmem [shape: f32[1,128], index: 4, kind: input, shape index: {}]
  %s5 = inlined_call_operand.hbm [shape: bf16[128,128], index: 5, kind: input, shape index: {}]
  %s6 = inlined_call_operand.vmem [shape: f32[1,128], index: 6, kind: input, shape index: {}]
  %s7 = inlined_call_operand.vmem [shape: f32[16,128], index: 7, kind: output, shape index: {}]
  %s8 = sld [smem:[#allocation0]]
  $region50: #{_forward_impl.1} parent=0
    _
  %s10 = ssub.s32 1, %s8
  %s11 = scalar_select 0, %s10, %s8
  $region1: #{_forward_impl.1} parent=0
    #allocation2 [shape = 'u8[32768]{0}', space=vmem, size = 0x8000, scoped, tag = 'input window, operand 1, single buffered']
    #allocation3 [shape = 's32[1]{0}', space=sflag, size = 0x4, scoped, tag = 'scoped memory for _forward_impl.1']
    #allocation4 [shape = 'u8[32768]{0}', space=vmem, size = 0x8000, scoped, tag = 'input window, operand 3, single buffered']
    #allocation5 [shape = 's32[1]{0}', space=sflag, size = 0x4, scoped, tag = 'scoped memory for _forward_impl.1']
    #allocation6 [shape = 'u8[32768]{0}', space=vmem, size = 0x8000, scoped, tag = 'input window, operand 5, single buffered']
    %12 = vsyncpa [#allocation3], 0
    %13 = vsyncpa [#allocation5], 0
    // Predicated region
    $region2: #{_forward_impl.1} parent=1 // pred_check
      _
    $region3: #{_forward_impl.1} parent=1 // pred_check_branch
      %15 = sbr.rel (0) target = $region5
    $region4: #{_forward_impl.1} parent=1 // pred_region
      _
    $region5: #{_forward_impl.1} parent=1 // pred_fallthru
      _
    // Predicated region
    $region6: #{_forward_impl.1} parent=1 // pred_check
      _
    $region7: #{_forward_impl.1} parent=1 // pred_check_branch
      %17 = sbr.rel (0) target = $region9
    $region8: #{_forward_impl.1} parent=1 // pred_region
      %s19 = ssub.s32 1024, 1024
      %20 = vsyncadd [#allocation3], %s19
      %s21 = sshll.u32 [#allocation2], 4
      %s22 = int_to_ptr.vmem [resolvable:$true] %s21
      %27 = dma.hbm_to_vmem [thread:$0]  %s1, 1024, %s22, [#allocation3], 64, 64, 4
    $region9: #{_forward_impl.1} parent=1 // pred_fallthru
      _
    // Predicated region
    $region10: #{_forward_impl.1} parent=1 // pred_check
      _
    $region11: #{_forward_impl.1} parent=1 // pred_check_branch
      %29 = sbr.rel (0) target = $region13
    $region12: #{_forward_impl.1} parent=1 // pred_region
      _
    $region13: #{_forward_impl.1} parent=1 // pred_fallthru
      _
    // Predicated region
    $region14: #{_forward_impl.1} parent=1 // pred_check
      _
    $region15: #{_forward_impl.1} parent=1 // pred_check_branch
      %31 = sbr.rel (0) target = $region17
    $region16: #{_forward_impl.1} parent=1 // pred_region
      %s33 = ssub.s32 1024, 1024
      %34 = vsyncadd [#allocation5], %s33
      %s35 = sshll.u32 [#allocation4], 4
      %s36 = int_to_ptr.vmem [resolvable:$true] %s35
      %41 = dma.hbm_to_vmem [thread:$0]  %s3, 1024, %s36, [#allocation5], 64, 64, 4
    $region17: #{_forward_impl.1} parent=1 // pred_fallthru
      _
    // Predicated region
    $region18: #{_forward_impl.1} parent=1 // pred_check
      _
    $region19: #{_forward_impl.1} parent=1 // pred_check_branch
      %43 = sbr.rel (0) target = $region21
    $region20: #{_forward_impl.1} parent=1 // pred_region
      _
    $region21: #{_forward_impl.1} parent=1 // pred_fallthru
      _
    // Predicated region
    $region22: #{_forward_impl.1} parent=1 // pred_check
      _
    $region23: #{_forward_impl.1} parent=1 // pred_check_branch
      %45 = sbr.rel (0) target = $region25
    $region24: #{_forward_impl.1} parent=1 // pred_region
      %s47 = ssub.s32 1024, 1024
      %48 = vsyncadd [#allocation5], %s47
      %s49 = sshll.u32 [#allocation6], 4
      %s50 = int_to_ptr.vmem [resolvable:$true] %s49
      %55 = dma.hbm_to_vmem [thread:$0]  %s5, 1024, %s50, [#allocation5], 64, 64, 4
    $region25: #{_forward_impl.1} parent=1 // pred_fallthru
      _
    // Predicated region
    $region26: #{_forward_impl.1} parent=1 // pred_check
      _
    $region27: #{_forward_impl.1} parent=1 // pred_check_branch
      %57 = sbr.rel (0) target = $region29
    $region28: #{_forward_impl.1} parent=1 // pred_region
      _
    $region29: #{_forward_impl.1} parent=1 // pred_fallthru
      _
    // Predicated region
    $region30: #{_forward_impl.1} parent=1 // pred_check
      _
    $region31: #{_forward_impl.1} parent=1 // pred_check_branch
      %59 = sbr.rel (0) target = $region33
    $region32: #{_forward_impl.1} parent=1 // pred_region
      %60 = dma.done [#allocation3], 1024
    $region33: #{_forward_impl.1} parent=1 // pred_fallthru
      _
    // Predicated region
    $region34: #{_forward_impl.1} parent=1 // pred_check
      _
    $region35: #{_forward_impl.1} parent=1 // pred_check_branch
      %62 = sbr.rel (0) target = $region37
    $region36: #{_forward_impl.1} parent=1 // pred_region
      %63 = dma.done [#allocation5], 1024
    $region37: #{_forward_impl.1} parent=1 // pred_fallthru
      _
    // Predicated region
    $region38: #{_forward_impl.1} parent=1 // pred_check
      _
    $region39: #{_forward_impl.1} parent=1 // pred_check_branch
      %65 = sbr.rel (0) target = $region41
    $region40: #{_forward_impl.1} parent=1 // pred_region
      %66 = dma.done [#allocation5], 1024
    $region41: #{_forward_impl.1} parent=1 // pred_fallthru
      _
    %v68 = vld [vmem:[%s0] sm:$0xf]
    %v69 = vld [vmem:[%s0 + $0x4] sm:$0xf]
    %v70 = vld [vmem:[#allocation2] sm:$0xf]
    %v71 = vld [vmem:[#allocation2 + $0x4] sm:$0xf]
    %v72 = vld [vmem:[#allocation2 + $0x8] sm:$0xf]
    %v73 = vld [vmem:[#allocation2 + $0xc] sm:$0xf]
    %v74 = vld [vmem:[#allocation2 + $0x10] sm:$0xf]
    %v75 = vld [vmem:[#allocation2 + $0x14] sm:$0xf]
    %v76 = vld [vmem:[#allocation2 + $0x18] sm:$0xf]
    %v77 = vld [vmem:[#allocation2 + $0x1c] sm:$0xf]
    %v78 = vld [vmem:[#allocation2 + $0x20] sm:$0xf]
    %v79 = vld [vmem:[#allocation2 + $0x24] sm:$0xf]
    %v80 = vld [vmem:[#allocation2 + $0x28] sm:$0xf]
    %v81 = vld [vmem:[#allocation2 + $0x2c] sm:$0xf]
    %v82 = vld [vmem:[#allocation2 + $0x30] sm:$0xf]
    %v83 = vld [vmem:[#allocation2 + $0x34] sm:$0xf]
    %v84 = vld [vmem:[#allocation2 + $0x38] sm:$0xf]
    %v85 = vld [vmem:[#allocation2 + $0x3c] sm:$0xf]
    %v86 = vld [vmem:[%s2] sm:$0x1]
    %v88 = vlaneseq
    %v89 = vshrl.u32 %v88, 7
    %v90 = vsub.s32 0, %v89
    %v91 = vrot.slane %v86, %v90
    %v95 = vunpack.c.l.b16 %v68
    %v96 = vunpack.c.l.b16 %v69
    %v97 = vpack.c.b16 %v96, %v95
    %v115 = vunpack.c.l.b16 %v70
    %v116 = vunpack.c.l.b16 %v71
    %v117 = vunpack.c.l.b16 %v72
    %v118 = vunpack.c.l.b16 %v73
    %v119 = vunpack.c.l.b16 %v74
    %v120 = vunpack.c.l.b16 %v75
    %v121 = vunpack.c.l.b16 %v76
    %v122 = vunpack.c.l.b16 %v77
    %v123 = vunpack.c.l.b16 %v78
    %v124 = vunpack.c.l.b16 %v79
    %v125 = vunpack.c.l.b16 %v80
    %v126 = vunpack.c.l.b16 %v81
    %v127 = vunpack.c.l.b16 %v82
    %v128 = vunpack.c.l.b16 %v83
    %v129 = vunpack.c.l.b16 %v84
    %v130 = vunpack.c.l.b16 %v85
    %v131 = vpack.c.b16 %v116, %v115
    %v132 = vpack.c.b16 %v118, %v117
    %v133 = vpack.c.b16 %v120, %v119
    %v134 = vpack.c.b16 %v122, %v121
    %v135 = vpack.c.b16 %v124, %v123
    %v136 = vpack.c.b16 %v126, %v125
    %v137 = vpack.c.b16 %v128, %v127
    %v138 = vpack.c.b16 %v130, %v129
    %147 = vmatprep.subr.bf16.mxu0 0
    %148 = vmatpush1.bf16.msra.mxu0 %v131
    %149 = vmatprep.subr.bf16.mxu0 0
    %150 = vmatpush1.bf16.msra.mxu0 %v132
    %151 = vmatprep.subr.bf16.mxu0 0
    %152 = vmatpush1.bf16.msra.mxu0 %v133
    %153 = vmatprep.subr.bf16.mxu0 0
    %154 = vmatpush1.bf16.msra.mxu0 %v134
    %155 = vmatprep.subr.bf16.mxu0 0
    %156 = vmatpush1.bf16.msra.mxu0 %v135
    %157 = vmatprep.subr.bf16.mxu0 0
    %158 = vmatpush1.bf16.msra.mxu0 %v136
    %159 = vmatprep.subr.bf16.mxu0 0
    %160 = vmatpush1.bf16.msra.mxu0 %v137
    %161 = vmatprep.subr.bf16.mxu0 0
    %162 = vmatpush1.bf16.msra.mxu0 %v138
    %163 = vmatprep.subr.bf16.mxu0 0
    %164 = vmatpush1.bf16.msra.mxu0 0
    %165 = vmatprep.subr.bf16.mxu0 0
    %166 = vmatpush1.bf16.msra.mxu0 0
    %167 = vmatprep.subr.bf16.mxu0 0
    %168 = vmatpush1.bf16.msra.mxu0 0
    %169 = vmatprep.subr.bf16.mxu0 0
    %170 = vmatpush1.bf16.msra.mxu0 0
    %171 = vmatprep.subr.bf16.mxu0 0
    %172 = vmatpush1.bf16.msra.mxu0 0
    %173 = vmatprep.subr.bf16.mxu0 0
    %174 = vmatpush1.bf16.msra.mxu0 0
    %175 = vmatprep.subr.bf16.mxu0 0
    %176 = vmatpush1.bf16.msra.mxu0 0
    %177 = vmatprep.subr.bf16.mxu0 0
    %178 = vmatpush1.bf16.msra.mxu0 0
    %179 = vmatprep.mubr.bf16.mxu0 0
    %180 = vmatmul.mubr.bf16.gmra.mrb[0].mxu0 %v97
    %v181 = vpop.f32.mrb[0].mxu0
    %v182 = vadd.f32 %v91, %v181
    %v183 = vpop.f32.mrb[0].mxu0
    %v184 = vpop.f32.mrb[0].mxu0
    %v185 = vadd.f32 %v91, %v184
    %v186 = vpop.f32.mrb[0].mxu0
    %187 = vdwg.mxu0
    %v188 = vmax.f32 %v182, 0.0
    %v189 = vmax.f32 %v185, 0.0
    %v190 = vpack.c.bf16 %v189, %v188
    %v191 = vld [vmem:[#allocation4] sm:$0xf]
    %v192 = vld [vmem:[#allocation4 + $0x4] sm:$0xf]
    %v193 = vld [vmem:[#allocation4 + $0x8] sm:$0xf]
    %v194 = vld [vmem:[#allocation4 + $0xc] sm:$0xf]
    %v195 = vld [vmem:[#allocation4 + $0x10] sm:$0xf]
    %v196 = vld [vmem:[#allocation4 + $0x14] sm:$0xf]
    %v197 = vld [vmem:[#allocation4 + $0x18] sm:$0xf]
    %v198 = vld [vmem:[#allocation4 + $0x1c] sm:$0xf]
    %v199 = vld [vmem:[#allocation4 + $0x20] sm:$0xf]
    %v200 = vld [vmem:[#allocation4 + $0x24] sm:$0xf]
    %v201 = vld [vmem:[#allocation4 + $0x28] sm:$0xf]
    %v202 = vld [vmem:[#allocation4 + $0x2c] sm:$0xf]
    %v203 = vld [vmem:[#allocation4 + $0x30] sm:$0xf]
    %v204 = vld [vmem:[#allocation4 + $0x34] sm:$0xf]
    %v205 = vld [vmem:[#allocation4 + $0x38] sm:$0xf]
    %v206 = vld [vmem:[#allocation4 + $0x3c] sm:$0xf]
    %v207 = vld [vmem:[%s4] sm:$0x1]
    %v209 = vlaneseq
    %v210 = vshrl.u32 %v209, 7
    %v211 = vsub.s32 0, %v210
    %v212 = vrot.slane %v207, %v211
    %v230 = vunpack.c.l.b16 %v191
    %v231 = vunpack.c.l.b16 %v192
    %v232 = vunpack.c.l.b16 %v193
    %v233 = vunpack.c.l.b16 %v194
    %v234 = vunpack.c.l.b16 %v195
    %v235 = vunpack.c.l.b16 %v196
    %v236 = vunpack.c.l.b16 %v197
    %v237 = vunpack.c.l.b16 %v198
    %v238 = vunpack.c.l.b16 %v199
    %v239 = vunpack.c.l.b16 %v200
    %v240 = vunpack.c.l.b16 %v201
    %v241 = vunpack.c.l.b16 %v202
    %v242 = vunpack.c.l.b16 %v203
    %v243 = vunpack.c.l.b16 %v204
    %v244 = vunpack.c.l.b16 %v205
    %v245 = vunpack.c.l.b16 %v206
    %v246 = vpack.c.b16 %v231, %v230
    %v247 = vpack.c.b16 %v233, %v232
    %v248 = vpack.c.b16 %v235, %v234
    %v249 = vpack.c.b16 %v237, %v236
    %v250 = vpack.c.b16 %v239, %v238
    %v251 = vpack.c.b16 %v241, %v240
    %v252 = vpack.c.b16 %v243, %v242
    %v253 = vpack.c.b16 %v245, %v244
    %262 = vmatprep.subr.bf16.mxu0 0
    %263 = vmatpush1.bf16.msra.mxu0 %v246
    %264 = vmatprep.subr.bf16.mxu0 0
    %265 = vmatpush1.bf16.msra.mxu0 %v247
    %266 = vmatprep.subr.bf16.mxu0 0
    %267 = vmatpush1.bf16.msra.mxu0 %v248
    %268 = vmatprep.subr.bf16.mxu0 0
    %269 = vmatpush1.bf16.msra.mxu0 %v249
    %270 = vmatprep.subr.bf16.mxu0 0
    %271 = vmatpush1.bf16.msra.mxu0 %v250
    %272 = vmatprep.subr.bf16.mxu0 0
    %273 = vmatpush1.bf16.msra.mxu0 %v251
    %274 = vmatprep.subr.bf16.mxu0 0
    %275 = vmatpush1.bf16.msra.mxu0 %v252
    %276 = vmatprep.subr.bf16.mxu0 0
    %277 = vmatpush1.bf16.msra.mxu0 %v253
    %278 = vmatprep.subr.bf16.mxu0 0
    %279 = vmatpush1.bf16.msra.mxu0 0
    %280 = vmatprep.subr.bf16.mxu0 0
    %281 = vmatpush1.bf16.msra.mxu0 0
    %282 = vmatprep.subr.bf16.mxu0 0
    %283 = vmatpush1.bf16.msra.mxu0 0
    %284 = vmatprep.subr.bf16.mxu0 0
    %285 = vmatpush1.bf16.msra.mxu0 0
    %286 = vmatprep.subr.bf16.mxu0 0
    %287 = vmatpush1.bf16.msra.mxu0 0
    %288 = vmatprep.subr.bf16.mxu0 0
    %289 = vmatpush1.bf16.msra.mxu0 0
    %290 = vmatprep.subr.bf16.mxu0 0
    %291 = vmatpush1.bf16.msra.mxu0 0
    %292 = vmatprep.subr.bf16.mxu0 0
    %293 = vmatpush1.bf16.msra.mxu0 0
    %294 = vmatprep.mubr.bf16.mxu0 0
    %295 = vmatmul.mubr.bf16.gmra.mrb[0].mxu0 %v190
    %v296 = vpop.f32.mrb[0].mxu0
    %v297 = vadd.f32 %v212, %v296
    %v298 = vpop.f32.mrb[0].mxu0
    %v299 = vpop.f32.mrb[0].mxu0
    %v300 = vadd.f32 %v212, %v299
    %v301 = vpop.f32.mrb[0].mxu0
    %302 = vdwg.mxu0
    %v303 = vadd.f32 %v182, %v297
    %v304 = vadd.f32 %v185, %v300
    %v305 = vmax.f32 %v297, 0.0
    %v306 = vmax.f32 %v300, 0.0
    %v307 = vpack.c.bf16 %v306, %v305
    %v308 = vld [vmem:[#allocation6] sm:$0xf]
    %v309 = vld [vmem:[#allocation6 + $0x4] sm:$0xf]
    %v310 = vld [vmem:[#allocation6 + $0x8] sm:$0xf]
    %v311 = vld [vmem:[#allocation6 + $0xc] sm:$0xf]
    %v312 = vld [vmem:[#allocation6 + $0x10] sm:$0xf]
    %v313 = vld [vmem:[#allocation6 + $0x14] sm:$0xf]
    %v314 = vld [vmem:[#allocation6 + $0x18] sm:$0xf]
    %v315 = vld [vmem:[#allocation6 + $0x1c] sm:$0xf]
    %v316 = vld [vmem:[#allocation6 + $0x20] sm:$0xf]
    %v317 = vld [vmem:[#allocation6 + $0x24] sm:$0xf]
    %v318 = vld [vmem:[#allocation6 + $0x28] sm:$0xf]
    %v319 = vld [vmem:[#allocation6 + $0x2c] sm:$0xf]
    %v320 = vld [vmem:[#allocation6 + $0x30] sm:$0xf]
    %v321 = vld [vmem:[#allocation6 + $0x34] sm:$0xf]
    %v322 = vld [vmem:[#allocation6 + $0x38] sm:$0xf]
    %v323 = vld [vmem:[#allocation6 + $0x3c] sm:$0xf]
    %v324 = vld [vmem:[%s6] sm:$0x1]
    %v326 = vlaneseq
    %v327 = vshrl.u32 %v326, 7
    %v328 = vsub.s32 0, %v327
    %v329 = vrot.slane %v324, %v328
    %v347 = vunpack.c.l.b16 %v308
    %v348 = vunpack.c.l.b16 %v309
    %v349 = vunpack.c.l.b16 %v310
    %v350 = vunpack.c.l.b16 %v311
    %v351 = vunpack.c.l.b16 %v312
    %v352 = vunpack.c.l.b16 %v313
    %v353 = vunpack.c.l.b16 %v314
    %v354 = vunpack.c.l.b16 %v315
    %v355 = vunpack.c.l.b16 %v316
    %v356 = vunpack.c.l.b16 %v317
    %v357 = vunpack.c.l.b16 %v318
    %v358 = vunpack.c.l.b16 %v319
    %v359 = vunpack.c.l.b16 %v320
    %v360 = vunpack.c.l.b16 %v321
    %v361 = vunpack.c.l.b16 %v322
    %v362 = vunpack.c.l.b16 %v323
    %v363 = vpack.c.b16 %v348, %v347
    %v364 = vpack.c.b16 %v350, %v349
    %v365 = vpack.c.b16 %v352, %v351
    %v366 = vpack.c.b16 %v354, %v353
    %v367 = vpack.c.b16 %v356, %v355
    %v368 = vpack.c.b16 %v358, %v357
    %v369 = vpack.c.b16 %v360, %v359
    %v370 = vpack.c.b16 %v362, %v361
    %379 = vmatprep.subr.bf16.mxu0 0
    %380 = vmatpush1.bf16.msra.mxu0 %v363
    %381 = vmatprep.subr.bf16.mxu0 0
    %382 = vmatpush1.bf16.msra.mxu0 %v364
    %383 = vmatprep.subr.bf16.mxu0 0
    %384 = vmatpush1.bf16.msra.mxu0 %v365
    %385 = vmatprep.subr.bf16.mxu0 0
    %386 = vmatpush1.bf16.msra.mxu0 %v366
    %387 = vmatprep.subr.bf16.mxu0 0
    %388 = vmatpush1.bf16.msra.mxu0 %v367
    %389 = vmatprep.subr.bf16.mxu0 0
    %390 = vmatpush1.bf16.msra.mxu0 %v368
    %391 = vmatprep.subr.bf16.mxu0 0
    %392 = vmatpush1.bf16.msra.mxu0 %v369
    %393 = vmatprep.subr.bf16.mxu0 0
    %394 = vmatpush1.bf16.msra.mxu0 %v370
    %395 = vmatprep.subr.bf16.mxu0 0
    %396 = vmatpush1.bf16.msra.mxu0 0
    %397 = vmatprep.subr.bf16.mxu0 0
    %398 = vmatpush1.bf16.msra.mxu0 0
    %399 = vmatprep.subr.bf16.mxu0 0
    %400 = vmatpush1.bf16.msra.mxu0 0
    %401 = vmatprep.subr.bf16.mxu0 0
    %402 = vmatpush1.bf16.msra.mxu0 0
    %403 = vmatprep.subr.bf16.mxu0 0
    %404 = vmatpush1.bf16.msra.mxu0 0
    %405 = vmatprep.subr.bf16.mxu0 0
    %406 = vmatpush1.bf16.msra.mxu0 0
    %407 = vmatprep.subr.bf16.mxu0 0
    %408 = vmatpush1.bf16.msra.mxu0 0
    %409 = vmatprep.subr.bf16.mxu0 0
    %410 = vmatpush1.bf16.msra.mxu0 0
    %411 = vmatprep.mubr.bf16.mxu0 0
    %412 = vmatmul.mubr.bf16.gmra.mrb[0].mxu0 %v307
    %v413 = vpop.f32.mrb[0].mxu0
    %v414 = vadd.f32 %v329, %v413
    %v415 = vpop.f32.mrb[0].mxu0
    %v416 = vpop.f32.mrb[0].mxu0
    %v417 = vadd.f32 %v329, %v416
    %v418 = vpop.f32.mrb[0].mxu0
    %419 = vdwg.mxu0
    %v420 = vadd.f32 %v303, %v414
    %v421 = vadd.f32 %v304, %v417
    %422 = vst [vmem:[%s7] sm:$0xff] %v420
    %423 = vst [vmem:[%s7 + $0x8] sm:$0xff] %v421
    // Predicated region
    $region42: #{_forward_impl.1} parent=1 // pred_check
      _
    $region43: #{_forward_impl.1} parent=1 // pred_check_branch
      %425 = sbr.rel (0) target = $region45
    $region44: #{_forward_impl.1} parent=1 // pred_region
      _
    $region45: #{_forward_impl.1} parent=1 // pred_fallthru
      _
    // Predicated region
    $region46: #{_forward_impl.1} parent=1 // pred_check
      _
    $region47: #{_forward_impl.1} parent=1 // pred_check_branch
      %427 = sbr.rel (0) target = $region49
    $region48: #{_forward_impl.1} parent=1 // pred_region
      _
    $region49: #{_forward_impl.1} parent=1 // pred_fallthru
      _
    %428 = vsyncpa [#allocation3], 1
    %429 = vsyncpa [#allocation5], 1

</llo_original>
